<compile_context>
chip_gen: v5e
topology: v5e:2x2
jax: 0.10.0
libtpu: 0.0.40
codegen_flags: <defaults>
</compile_context>

<pallas_src>
import functools

import jax
import jax.numpy as jnp
from jax.experimental import pallas as pl
from jax.experimental.pallas import tpu as pltpu


# ---------------------------------------------------------------------------
# Kernel: works for both layouts (N, C, HW) and (N, C, S, 128) because the
# channel axis is always dim 1 and everything else is elementwise.
# ---------------------------------------------------------------------------
def _conv1x1_kernel(x_ref, w_ref, b_ref, o_ref, *, cout, cin):
    # x_ref: VMEM (N, Cin, ...spatial)
    # w_ref: SMEM (Cout*Cin,) f32   flat scalar weights, w[co, ci] = w_ref[co*cin+ci]
    # b_ref: SMEM (Cout,)     f32   scalar bias
    # o_ref: VMEM (N, Cout, ...spatial)
    for co in range(cout):
        # Lazy per-channel reads: only one channel slab live at a time.
        acc = x_ref[:, 0].astype(jnp.float32) * w_ref[co * cin + 0] + b_ref[co]
        for ci in range(1, cin):
            acc = acc + x_ref[:, ci].astype(jnp.float32) * w_ref[co * cin + ci]
        # Per-channel, lane/sublane-dense, unmasked store.
        o_ref[:, co] = acc.astype(o_ref.dtype)


# ---------------------------------------------------------------------------
# Block-row picker (S = rows of 128 lanes per block).
# ---------------------------------------------------------------------------
def _pick_block_rows(rows, *, sub_mult, target_rows, max_rows):
    """Pick S with S % sub_mult == 0 and S | rows.

    Preference order (within cap = min(target_rows, max_rows)):
      1. largest S giving an even number of >=2 grid steps (v7x: 2 TCs),
      2. largest S giving >=2 grid steps,
      3. largest S that fits the cap,
      4. smallest valid divisor / full rows (correct, possibly 1 step).
    """
    cap = max(sub_mult, min(target_rows, max_rows))
    divisors = [s for s in range(sub_mult, rows + 1, sub_mult) if rows % s == 0]
    if not divisors:
        return rows  # block dim == full array dim is always legal
    best_even = best_multi = best_any = 0
    for s in divisors:
        if s > cap:
            continue
        best_any = max(best_any, s)
        steps = rows // s
        if steps >= 2:
            best_multi = max(best_multi, s)
            if steps % 2 == 0:
                best_even = max(best_even, s)
    if best_even:
        return best_even
    if best_multi:
        return best_multi
    if best_any:
        return best_any
    return divisors[0]


# ---------------------------------------------------------------------------
# Wrapper
# ---------------------------------------------------------------------------
_FAST_PATH_MAX_HW = 2048          # below this a pipelined grid is pure overhead
_VMEM_BLOCK_BUDGET = 6 * 1024 * 1024  # double-buffered in+out blocks (fits v5e/v7x defaults)


def conv1x1(x_nchw, weight, bias, *, target_lanes=16384):
    """1x1 convolution.  x_nchw: (N, Cin, H, W); weight: (Cout, Cin, 1, 1); bias: (Cout,)."""
    N, Cin, H, W = x_nchw.shape
    Cout = weight.shape[0]
    HW = H * W
    dtype = x_nchw.dtype
    elem = jnp.dtype(dtype).itemsize

    w_flat = weight.reshape(Cout * Cin).astype(jnp.float32)
    b = bias.reshape(Cout).astype(jnp.float32)

    kernel = functools.partial(_conv1x1_kernel, cout=Cout, cin=Cin)

    cost = pl.CostEstimate(
        flops=2 * N * Cout * Cin * HW,
        transcendentals=0,
        bytes_accessed=N * (Cin + Cout) * HW * elem + (Cout * Cin + Cout) * 4,
    )

    # ---- Fast path: tiny problem or HW not lane-aligned -> single full block,
    #      no grid, no pipeline ramp. -----------------------------------------
    if HW % 128 != 0 or HW <= _FAST_PATH_MAX_HW:
        x = x_nchw.reshape(N, Cin, HW)
        out = pl.pallas_call(
            kernel,
            out_shape=jax.ShapeDtypeStruct((N, Cout, HW), dtype),
            in_specs=[
                pl.BlockSpec(memory_space=pltpu.MemorySpace.VMEM),
                pl.BlockSpec(memory_space=pltpu.MemorySpace.SMEM),
                pl.BlockSpec(memory_space=pltpu.MemorySpace.SMEM),
            ],
            out_specs=pl.BlockSpec(memory_space=pltpu.MemorySpace.VMEM),
            cost_estimate=cost,
        )(x, w_flat, b)
        return out.reshape(N, Cout, H, W)

    # ---- Tiled path: lane/sublane-dense blocks over the spatial axis. --------
    rows = HW // 128
    x = x_nchw.reshape(N, Cin, rows, 128)

    sub_mult = 16 if dtype == jnp.bfloat16 else 8
    per_row_bytes = N * (Cin + Cout) * 128 * elem          # one row of in+out block
    max_rows = max(sub_mult, (_VMEM_BLOCK_BUDGET // (2 * per_row_bytes)) // sub_mult * sub_mult)
    target_rows = max(sub_mult, target_lanes // 128)

    S = _pick_block_rows(rows, sub_mult=sub_mult, target_rows=target_rows, max_rows=max_rows)
    num_tiles = rows // S

    grid_spec = pl.GridSpec(
        grid=(num_tiles,),
        in_specs=[
            pl.BlockSpec((N, Cin, S, 128), lambda t: (0, 0, t, 0)),
            pl.BlockSpec(memory_space=pltpu.MemorySpace.SMEM),
            pl.BlockSpec(memory_space=pltpu.MemorySpace.SMEM),
        ],
        out_specs=pl.BlockSpec((N, Cout, S, 128), lambda t: (0, 0, t, 0)),
    )

    out = pl.pallas_call(
        kernel,
        out_shape=jax.ShapeDtypeStruct((N, Cout, rows, 128), dtype),
        grid_spec=grid_spec,
        compiler_params=pltpu.CompilerParams(
            dimension_semantics=("parallel",),
        ),
        cost_estimate=cost,
    )(x, w_flat, b)

    return out.reshape(N, Cout, H, W)


# ---------------------------------------------------------------------------
# Self-test
# ---------------------------------------------------------------------------
if __name__ == "__main__":
    key = jax.random.PRNGKey(0)
    kx1, kx2, kw, kb = jax.random.split(key, 4)

    Cin, Cout = 3, 3  # Conv2d(3, 3, 1)
    bound = 1.0 / (Cin ** 0.5)
    weight = jax.random.uniform(
        kw, (Cout, Cin, 1, 1), minval=-bound, maxval=bound, dtype=jnp.float32
    )
    bias = jax.random.uniform(
        kb, (Cout,), minval=-bound, maxval=bound, dtype=jnp.float32
    )

    def ref_conv(x):
        return (
            jnp.einsum("oc,nchw->nohw", weight.reshape(Cout, Cin), x)
            + bias.reshape(1, Cout, 1, 1)
        )

    # 1) Small shape -> no-grid fast path.
    x_small = jax.random.normal(kx1, (2, Cin, 16, 16), dtype=jnp.float32)
    y_small = conv1x1(x_small, weight, bias)
    jax.block_until_ready(y_small)
    assert y_small.shape == (2, Cout, 16, 16)
    assert jnp.allclose(y_small, ref_conv(x_small), atol=1e-5, rtol=1e-5)

    # 2) Larger spatial shape -> tiled lane/sublane-dense path (even >=2-step grid).
    x_big = jax.random.normal(kx2, (1, Cin, 64, 64), dtype=jnp.float32)
    y_big = conv1x1(x_big, weight, bias)
    jax.block_until_ready(y_big)
    assert y_big.shape == (1, Cout, 64, 64)
    assert jnp.allclose(y_big, ref_conv(x_big), atol=1e-5, rtol=1e-5)

    print("KERNEL_OK")
</pallas_src>

<mosaic_0001>
module attributes {stable_mosaic.version = 11 : i64} {
  func.func @_conv1x1_kernel(%arg0: memref<2x3x256xf32, #tpu.memory_space<vmem>>, %arg1: memref<9xf32, #tpu.memory_space<smem>>, %arg2: memref<3xf32, #tpu.memory_space<smem>>, %arg3: memref<2x3x256xf32, #tpu.memory_space<vmem>>) attributes {dimension_semantics = [], scalar_prefetch = 0 : i64, scratch_operands = 0 : i64, tpu.core_type = #tpu.core_type<tc>} {
    %c0 = arith.constant 0 : index
    %c0_0 = arith.constant 0 : index
    %c0_1 = arith.constant 0 : index
    %0 = vector.load %arg0[%c0, %c0_0, %c0_1] : memref<2x3x256xf32, #tpu.memory_space<vmem>>, vector<2x1x256xf32>
    %1 = vector.shape_cast %0 : vector<2x1x256xf32> to vector<2x256xf32>
    %c0_2 = arith.constant 0 : index
    %2 = memref.load %arg1[%c0_2] : memref<9xf32, #tpu.memory_space<smem>>
    %3 = vector.broadcast %2 : f32 to vector<2x256xf32>
    %4 = arith.mulf %1, %3 : vector<2x256xf32>
    %c0_3 = arith.constant 0 : index
    %5 = memref.load %arg2[%c0_3] : memref<3xf32, #tpu.memory_space<smem>>
    %6 = vector.broadcast %5 : f32 to vector<2x256xf32>
    %7 = arith.addf %4, %6 : vector<2x256xf32>
    %c0_4 = arith.constant 0 : index
    %c1 = arith.constant 1 : index
    %c0_5 = arith.constant 0 : index
    %8 = vector.load %arg0[%c0_4, %c1, %c0_5] : memref<2x3x256xf32, #tpu.memory_space<vmem>>, vector<2x1x256xf32>
    %9 = vector.shape_cast %8 : vector<2x1x256xf32> to vector<2x256xf32>
    %c1_6 = arith.constant 1 : index
    %10 = memref.load %arg1[%c1_6] : memref<9xf32, #tpu.memory_space<smem>>
    %11 = vector.broadcast %10 : f32 to vector<2x256xf32>
    %12 = arith.mulf %9, %11 : vector<2x256xf32>
    %13 = arith.addf %7, %12 : vector<2x256xf32>
    %c0_7 = arith.constant 0 : index
    %c2 = arith.constant 2 : index
    %c0_8 = arith.constant 0 : index
    %14 = vector.load %arg0[%c0_7, %c2, %c0_8] : memref<2x3x256xf32, #tpu.memory_space<vmem>>, vector<2x1x256xf32>
    %15 = vector.shape_cast %14 : vector<2x1x256xf32> to vector<2x256xf32>
    %c2_9 = arith.constant 2 : index
    %16 = memref.load %arg1[%c2_9] : memref<9xf32, #tpu.memory_space<smem>>
    %17 = vector.broadcast %16 : f32 to vector<2x256xf32>
    %18 = arith.mulf %15, %17 : vector<2x256xf32>
    %19 = arith.addf %13, %18 : vector<2x256xf32>
    %c0_10 = arith.constant 0 : index
    %c0_11 = arith.constant 0 : index
    %c0_12 = arith.constant 0 : index
    %20 = vector.load %arg3[%c0_10, %c0_11, %c0_12] : memref<2x3x256xf32, #tpu.memory_space<vmem>>, vector<2x1x256xf32>
    %21 = vector.shape_cast %20 : vector<2x1x256xf32> to vector<2x256xf32>
    %22 = vector.shape_cast %19 : vector<2x256xf32> to vector<2x1x256xf32>
    tpu.vector_store %arg3[%c0_10, %c0_11, %c0_12], %22 {strides = array<i32>} : memref<2x3x256xf32, #tpu.memory_space<vmem>>, vector<2x1x256xf32>,
    %c0_13 = arith.constant 0 : index
    %c0_14 = arith.constant 0 : index
    %c0_15 = arith.constant 0 : index
    %23 = vector.load %arg0[%c0_13, %c0_14, %c0_15] : memref<2x3x256xf32, #tpu.memory_space<vmem>>, vector<2x1x256xf32>
    %24 = vector.shape_cast %23 : vector<2x1x256xf32> to vector<2x256xf32>
    %c3 = arith.constant 3 : index
    %25 = memref.load %arg1[%c3] : memref<9xf32, #tpu.memory_space<smem>>
    %26 = vector.broadcast %25 : f32 to vector<2x256xf32>
    %27 = arith.mulf %24, %26 : vector<2x256xf32>
    %c1_16 = arith.constant 1 : index
    %28 = memref.load %arg2[%c1_16] : memref<3xf32, #tpu.memory_space<smem>>
    %29 = vector.broadcast %28 : f32 to vector<2x256xf32>
    %30 = arith.addf %27, %29 : vector<2x256xf32>
    %c0_17 = arith.constant 0 : index
    %c1_18 = arith.constant 1 : index
    %c0_19 = arith.constant 0 : index
    %31 = vector.load %arg0[%c0_17, %c1_18, %c0_19] : memref<2x3x256xf32, #tpu.memory_space<vmem>>, vector<2x1x256xf32>
    %32 = vector.shape_cast %31 : vector<2x1x256xf32> to vector<2x256xf32>
    %c4 = arith.constant 4 : index
    %33 = memref.load %arg1[%c4] : memref<9xf32, #tpu.memory_space<smem>>
    %34 = vector.broadcast %33 : f32 to vector<2x256xf32>
    %35 = arith.mulf %32, %34 : vector<2x256xf32>
    %36 = arith.addf %30, %35 : vector<2x256xf32>
    %c0_20 = arith.constant 0 : index
    %c2_21 = arith.constant 2 : index
    %c0_22 = arith.constant 0 : index
    %37 = vector.load %arg0[%c0_20, %c2_21, %c0_22] : memref<2x3x256xf32, #tpu.memory_space<vmem>>, vector<2x1x256xf32>
    %38 = vector.shape_cast %37 : vector<2x1x256xf32> to vector<2x256xf32>
    %c5 = arith.constant 5 : index
    %39 = memref.load %arg1[%c5] : memref<9xf32, #tpu.memory_space<smem>>
    %40 = vector.broadcast %39 : f32 to vector<2x256xf32>
    %41 = arith.mulf %38, %40 : vector<2x256xf32>
    %42 = arith.addf %36, %41 : vector<2x256xf32>
    %c0_23 = arith.constant 0 : index
    %c1_24 = arith.constant 1 : index
    %c0_25 = arith.constant 0 : index
    %43 = vector.load %arg3[%c0_23, %c1_24, %c0_25] : memref<2x3x256xf32, #tpu.memory_space<vmem>>, vector<2x1x256xf32>
    %44 = vector.shape_cast %43 : vector<2x1x256xf32> to vector<2x256xf32>
    %45 = vector.shape_cast %42 : vector<2x256xf32> to vector<2x1x256xf32>
    tpu.vector_store %arg3[%c0_23, %c1_24, %c0_25], %45 {strides = array<i32>} : memref<2x3x256xf32, #tpu.memory_space<vmem>>, vector<2x1x256xf32>,
    %c0_26 = arith.constant 0 : index
    %c0_27 = arith.constant 0 : index
    %c0_28 = arith.constant 0 : index
    %46 = vector.load %arg0[%c0_26, %c0_27, %c0_28] : memref<2x3x256xf32, #tpu.memory_space<vmem>>, vector<2x1x256xf32>
    %47 = vector.shape_cast %46 : vector<2x1x256xf32> to vector<2x256xf32>
    %c6 = arith.constant 6 : index
    %48 = memref.load %arg1[%c6] : memref<9xf32, #tpu.memory_space<smem>>
    %49 = vector.broadcast %48 : f32 to vector<2x256xf32>
    %50 = arith.mulf %47, %49 : vector<2x256xf32>
    %c2_29 = arith.constant 2 : index
    %51 = memref.load %arg2[%c2_29] : memref<3xf32, #tpu.memory_space<smem>>
    %52 = vector.broadcast %51 : f32 to vector<2x256xf32>
    %53 = arith.addf %50, %52 : vector<2x256xf32>
    %c0_30 = arith.constant 0 : index
    %c1_31 = arith.constant 1 : index
    %c0_32 = arith.constant 0 : index
    %54 = vector.load %arg0[%c0_30, %c1_31, %c0_32] : memref<2x3x256xf32, #tpu.memory_space<vmem>>, vector<2x1x256xf32>
    %55 = vector.shape_cast %54 : vector<2x1x256xf32> to vector<2x256xf32>
    %c7 = arith.constant 7 : index
    %56 = memref.load %arg1[%c7] : memref<9xf32, #tpu.memory_space<smem>>
    %57 = vector.broadcast %56 : f32 to vector<2x256xf32>
    %58 = arith.mulf %55, %57 : vector<2x256xf32>
    %59 = arith.addf %53, %58 : vector<2x256xf32>
    %c0_33 = arith.constant 0 : index
    %c2_34 = arith.constant 2 : index
    %c0_35 = arith.constant 0 : index
    %60 = vector.load %arg0[%c0_33, %c2_34, %c0_35] : memref<2x3x256xf32, #tpu.memory_space<vmem>>, vector<2x1x256xf32>
    %61 = vector.shape_cast %60 : vector<2x1x256xf32> to vector<2x256xf32>
    %c8 = arith.constant 8 : index
    %62 = memref.load %arg1[%c8] : memref<9xf32, #tpu.memory_space<smem>>
    %63 = vector.broadcast %62 : f32 to vector<2x256xf32>
    %64 = arith.mulf %61, %63 : vector<2x256xf32>
    %65 = arith.addf %59, %64 : vector<2x256xf32>
    %c0_36 = arith.constant 0 : index
    %c2_37 = arith.constant 2 : index
    %c0_38 = arith.constant 0 : index
    %66 = vector.load %arg3[%c0_36, %c2_37, %c0_38] : memref<2x3x256xf32, #tpu.memory_space<vmem>>, vector<2x1x256xf32>
    %67 = vector.shape_cast %66 : vector<2x1x256xf32> to vector<2x256xf32>
    %68 = vector.shape_cast %65 : vector<2x256xf32> to vector<2x1x256xf32>
    tpu.vector_store %arg3[%c0_36, %c2_37, %c0_38], %68 {strides = array<i32>} : memref<2x3x256xf32, #tpu.memory_space<vmem>>, vector<2x1x256xf32>,
    return
  }
}

</mosaic_0001>

<llo_original>
// kernel: tpu_custom_call.1
$region0: #{tpu_custom_call.1}
  #allocation0 [shape = 'u32[]', space=smem, size = 0x4, offset = 0x4, fixed_abs, tag = 'smem constant byte address 0x4 - core index']
  #allocation1 [shape = 'u32[72,128]{1,0:T(1,128)}', space=vmem, size = 0x9000, scoped, tag = 'internal scratch']
  %s0 = inlined_call_operand.vmem [shape: f32[2,3,256], index: 0, kind: input, shape index: {}]
  %s1 = inlined_call_operand.vmem [shape: f32[9], index: 1, kind: input, shape index: {}]
  %s2 = inlined_call_operand.vmem [shape: f32[3], index: 2, kind: input, shape index: {}]
  %s3 = inlined_call_operand.vmem [shape: f32[2,3,256], index: 3, kind: output, shape index: {}]
  %s4 = sld [smem:[#allocation0]]
  $region30: #{tpu_custom_call.1} parent=0
    _
  %s6 = ssub.s32 1, %s4
  %s7 = scalar_select 0, %s6, %s4
  $region1: #{tpu_custom_call.1} parent=0
    #allocation2 [shape = 'u8[512]{0}', space=smem, size = 0x200, scoped, tag = 'input window, operand 1, single buffered']
    #allocation3 [shape = 's32[1]{0}', space=sflag, size = 0x4, scoped, tag = 'scoped memory for tpu_custom_call.1']
    #allocation4 [shape = 'u8[512]{0}', space=smem, size = 0x200, scoped, tag = 'input window, operand 2, single buffered']
    #allocation5 [shape = 's32[1]{0}', space=sflag, size = 0x4, scoped, tag = 'scoped memory for tpu_custom_call.1']
    %8 = vsyncpa [#allocation3], 0
    %9 = vsyncpa [#allocation5], 0
    // Predicated region
    $region2: #{tpu_custom_call.1} parent=1 // pred_check
      _
    $region3: #{tpu_custom_call.1} parent=1 // pred_check_branch
      %11 = sbr.rel (0) target = $region5
    $region4: #{tpu_custom_call.1} parent=1 // pred_region
      _
    $region5: #{tpu_custom_call.1} parent=1 // pred_fallthru
      _
    // Predicated region
    $region6: #{tpu_custom_call.1} parent=1 // pred_check
      _
    $region7: #{tpu_custom_call.1} parent=1 // pred_check_branch
      %13 = sbr.rel (0) target = $region9
    $region8: #{tpu_custom_call.1} parent=1 // pred_region
      %15 = vsyncadd [#allocation3], 0
      %s17 = sshll.u32 %s1, 4
      %s18 = int_to_ptr.vmem [resolvable:$true] %s17
      %20 = dma.vmem_to_smem %s18, 16, [#allocation2], [#allocation3]
    $region9: #{tpu_custom_call.1} parent=1 // pred_fallthru
      _
    // Predicated region
    $region10: #{tpu_custom_call.1} parent=1 // pred_check
      _
    $region11: #{tpu_custom_call.1} parent=1 // pred_check_branch
      %22 = sbr.rel (0) target = $region13
    $region12: #{tpu_custom_call.1} parent=1 // pred_region
      %24 = vsyncadd [#allocation5], 0
      %s26 = sshll.u32 %s2, 4
      %s27 = int_to_ptr.vmem [resolvable:$true] %s26
      %29 = dma.vmem_to_smem %s27, 16, [#allocation4], [#allocation5]
    $region13: #{tpu_custom_call.1} parent=1 // pred_fallthru
      _
    // Predicated region
    $region14: #{tpu_custom_call.1} parent=1 // pred_check
      _
    $region15: #{tpu_custom_call.1} parent=1 // pred_check_branch
      %31 = sbr.rel (0) target = $region17
    $region16: #{tpu_custom_call.1} parent=1 // pred_region
      %33 = dma.done [#allocation3], 16
    $region17: #{tpu_custom_call.1} parent=1 // pred_fallthru
      _
    // Predicated region
    $region18: #{tpu_custom_call.1} parent=1 // pred_check
      _
    $region19: #{tpu_custom_call.1} parent=1 // pred_check_branch
      %35 = sbr.rel (0) target = $region21
    $region20: #{tpu_custom_call.1} parent=1 // pred_region
      %37 = dma.done [#allocation5], 16
    $region21: #{tpu_custom_call.1} parent=1 // pred_fallthru
      _
    %38 = sfence
    %v39 = vld [vmem:[%s0] ss:$4 sm:$0x3]
    %s40 = scalar_lea.vmem %s0, 8
    %v41 = vld [vmem:[%s40] ss:$4 sm:$0x3]
    %s42 = sld [smem:[#allocation2]]
    %v43 = vstv %s42
    %v44 = vmul.f32 %v39, %v43
    %v45 = vmul.f32 %v41, %v43
    %s46 = sld [smem:[#allocation4]]
    %v47 = vstv %s46
    %v48 = vadd.f32 %v44, %v47
    %v49 = vadd.f32 %v45, %v47
    %s50 = scalar_lea.vmem %s0, 1
    %v51 = vld [vmem:[%s50] ss:$4 sm:$0x3]
    %s52 = scalar_lea.vmem %s0, 9
    %v53 = vld [vmem:[%s52] ss:$4 sm:$0x3]
    %s54 = sld [smem:[#allocation2 + $0x1]]
    %v55 = vstv %s54
    %v56 = vmul.f32 %v51, %v55
    %v57 = vmul.f32 %v53, %v55
    %v58 = vadd.f32 %v48, %v56
    %v59 = vadd.f32 %v49, %v57
    %s60 = scalar_lea.vmem %s0, 2
    %v61 = vld [vmem:[%s60] ss:$4 sm:$0x3]
    %s62 = scalar_lea.vmem %s0, 10
    %v63 = vld [vmem:[%s62] ss:$4 sm:$0x3]
    %s64 = sld [smem:[#allocation2 + $0x2]]
    %v65 = vstv %s64
    %v66 = vmul.f32 %v61, %v65
    %v67 = vmul.f32 %v63, %v65
    %v68 = vadd.f32 %v58, %v66
    %v69 = vadd.f32 %v59, %v67
    %v70 = vlaneseq
    %vm71 = vcmp.ge.s32.totalorder %v70, 0
    %vm72 = vcmp.lt.s32.totalorder %v70, 256
    %vm73 = vmand %vm71, %vm72
    %74 = vst.msk [vmem:[%s3] ss:$4 sm:$0x3] %vm73, %v68
    %s75 = scalar_lea.vmem %s3, 8
    %76 = vst.msk [vmem:[%s75] ss:$4 sm:$0x3] %vm73, %v69
    %v77 = vld [vmem:[%s0] ss:$4 sm:$0x3]
    %v78 = vld [vmem:[%s40] ss:$4 sm:$0x3]
    %s79 = sld [smem:[#allocation2 + $0x3]]
    %v80 = vstv %s79
    %v81 = vmul.f32 %v77, %v80
    %v82 = vmul.f32 %v78, %v80
    %s83 = sld [smem:[#allocation4 + $0x1]]
    %v84 = vstv %s83
    %v85 = vadd.f32 %v81, %v84
    %v86 = vadd.f32 %v82, %v84
    %v87 = vld [vmem:[%s50] ss:$4 sm:$0x3]
    %v88 = vld [vmem:[%s52] ss:$4 sm:$0x3]
    %s89 = sld [smem:[#allocation2 + $0x4]]
    %v90 = vstv %s89
    %v91 = vmul.f32 %v87, %v90
    %v92 = vmul.f32 %v88, %v90
    %v93 = vadd.f32 %v85, %v91
    %v94 = vadd.f32 %v86, %v92
    %v95 = vld [vmem:[%s60] ss:$4 sm:$0x3]
    %v96 = vld [vmem:[%s62] ss:$4 sm:$0x3]
    %s97 = sld [smem:[#allocation2 + $0x5]]
    %v98 = vstv %s97
    %v99 = vmul.f32 %v95, %v98
    %v100 = vmul.f32 %v96, %v98
    %v101 = vadd.f32 %v93, %v99
    %v102 = vadd.f32 %v94, %v100
    %s103 = scalar_lea.vmem %s3, 1
    %104 = vst.msk [vmem:[%s103] ss:$4 sm:$0x3] %vm73, %v101
    %s105 = scalar_lea.vmem %s3, 9
    %106 = vst.msk [vmem:[%s105] ss:$4 sm:$0x3] %vm73, %v102
    %v107 = vld [vmem:[%s0] ss:$4 sm:$0x3]
    %v108 = vld [vmem:[%s40] ss:$4 sm:$0x3]
    %s109 = sld [smem:[#allocation2 + $0x6]]
    %v110 = vstv %s109
    %v111 = vmul.f32 %v107, %v110
    %v112 = vmul.f32 %v108, %v110
    %s113 = sld [smem:[#allocation4 + $0x2]]
    %v114 = vstv %s113
    %v115 = vadd.f32 %v111, %v114
    %v116 = vadd.f32 %v112, %v114
    %v117 = vld [vmem:[%s50] ss:$4 sm:$0x3]
    %v118 = vld [vmem:[%s52] ss:$4 sm:$0x3]
    %s119 = sld [smem:[#allocation2 + $0x7]]
    %v120 = vstv %s119
    %v121 = vmul.f32 %v117, %v120
    %v122 = vmul.f32 %v118, %v120
    %v123 = vadd.f32 %v115, %v121
    %v124 = vadd.f32 %v116, %v122
    %v125 = vld [vmem:[%s60] ss:$4 sm:$0x3]
    %v126 = vld [vmem:[%s62] ss:$4 sm:$0x3]
    %s127 = sld [smem:[#allocation2 + $0x8]]
    %v128 = vstv %s127
    %v129 = vmul.f32 %v125, %v128
    %v130 = vmul.f32 %v126, %v128
    %v131 = vadd.f32 %v123, %v129
    %v132 = vadd.f32 %v124, %v130
    %s133 = scalar_lea.vmem %s3, 2
    %134 = vst.msk [vmem:[%s133] ss:$4 sm:$0x3] %vm73, %v131
    %s135 = scalar_lea.vmem %s3, 10
    %136 = vst.msk [vmem:[%s135] ss:$4 sm:$0x3] %vm73, %v132
    // Predicated region
    $region22: #{tpu_custom_call.1} parent=1 // pred_check
      _
    $region23: #{tpu_custom_call.1} parent=1 // pred_check_branch
      %138 = sbr.rel (0) target = $region25
    $region24: #{tpu_custom_call.1} parent=1 // pred_region
      _
    $region25: #{tpu_custom_call.1} parent=1 // pred_fallthru
      _
    // Predicated region
    $region26: #{tpu_custom_call.1} parent=1 // pred_check
      _
    $region27: #{tpu_custom_call.1} parent=1 // pred_check_branch
      %140 = sbr.rel (0) target = $region29
    $region28: #{tpu_custom_call.1} parent=1 // pred_region
      _
    $region29: #{tpu_custom_call.1} parent=1 // pred_fallthru
      _
    %141 = vsyncpa [#allocation3], 1
    %142 = vsyncpa [#allocation5], 1

</llo_original>
